<compile_context>
chip_gen: v7x
topology: tpu7x:2x2x1
jax: 0.10.0
libtpu: 0.0.40
codegen_flags: <defaults>
</compile_context>

<pallas_src>
import functools

import jax
import jax.numpy as jnp
from jax.experimental import pallas as pl
from jax.experimental.pallas import tpu as pltpu


def _round_up(x, m):
    return ((x + m - 1) // m) * m


def _make_loss_kernel(embedding_sizes, batch, tile_b):
    c_total = sum(v for v, _ in embedding_sizes)
    offsets = []
    pos = 0
    for v, _ in embedding_sizes:
        offsets.append(pos)
        pos += v

    def kernel(cats_ref, tgt_ref, nums_ref, ntgt_ref, ce_out_ref, sq_out_ref):
        i = pl.program_id(0)

        # Lane-validity mask for the (possibly ragged) last tile.  OOB lanes of a
        # partial block hold unspecified data; they stay confined to their own lanes
        # (all ops below are per-lane until the final reduce) and are selected out
        # with jnp.where, which is NaN/inf safe (unlike multiplicative masking).
        lane_ids = i * tile_b + jax.lax.broadcasted_iota(jnp.int32, (1, tile_b), 1)
        valid = lane_ids < batch                                   # [1, tile_b]

        # One load + one f32 cast per input per tile.
        cats = cats_ref[...].astype(jnp.float32)                   # [c_total, tile_b]
        tgts = tgt_ref[...]                                        # [n_feat, tile_b] i32
        nums = nums_ref[...].astype(jnp.float32)                   # [d_num, tile_b]
        ntgt = ntgt_ref[...].astype(jnp.float32)                   # [d_num, tile_b]

        # Hoisted sublane-iota over the concatenated class axis; per-feature compares
        # are only v_f sublanes wide (no materialized full-width multi-hot).
        class_iota = jax.lax.broadcasted_iota(jnp.int32, (c_total, tile_b), 0)

        ce_row = jnp.zeros((1, tile_b), jnp.float32)
        # Static unroll over categorical features (embedding_sizes is a Python constant).
        for f, (v, _) in enumerate(embedding_sizes):
            p = offsets[f]
            logits = cats[p:p + v, :]                              # [v, tile_b]
            m = jnp.max(logits, axis=0, keepdims=True)             # [1, tile_b]
            lse = m + jnp.log(jnp.sum(jnp.exp(logits - m), axis=0, keepdims=True))
            g = tgts[f:f + 1, :] + p                               # global class row id
            onehot = class_iota[p:p + v, :] == g                   # [v, tile_b]
            tgt_logit = jnp.sum(jnp.where(onehot, logits, 0.0), axis=0, keepdims=True)
            ce_row = ce_row + (lse - tgt_logit)

        diff = nums - ntgt
        sq_row = jnp.sum(diff * diff, axis=0, keepdims=True)        # [1, tile_b]

        zero = jnp.float32(0.0)
        ce_sum = jnp.sum(jnp.where(valid, ce_row, zero))            # per-tile partials
        sq_sum = jnp.sum(jnp.where(valid, sq_row, zero))

        # Full, unmasked (8,128) block stores so the grid axis can be "parallel"
        # (no loop-carried accumulator); wrapper reduces across tiles.
        ce_out_ref[...] = jnp.full((1, 8, 128), ce_sum, jnp.float32)
        sq_out_ref[...] = jnp.full((1, 8, 128), sq_sum, jnp.float32)

    return kernel


def custom_loss(cats, cat_targets, nums, num_targets, *, embedding_sizes, tile_b=None):
    """Pallas implementation of CustomLoss.forward((cats, nums), cat_targets, num_targets)."""
    B, c_total = cats.shape
    n_feat = len(embedding_sizes)
    d_num = nums.shape[1]
    assert c_total == sum(v for v, _ in embedding_sizes)
    assert cat_targets.shape == (B, n_feat)
    assert num_targets.shape == (B, d_num)

    # Feature-major layout: batch on the lane axis so exp / compares / reductions are
    # lane-dense.  TODO(synk): have the producer emit these transposed arrays directly
    # to save this one extra XLA transpose pass over the inputs.
    cats_t = jnp.transpose(cats)                                  # [c_total, B]
    tgts_t = jnp.transpose(cat_targets.astype(jnp.int32))         # [n_feat,  B]
    nums_t = jnp.transpose(nums)                                  # [d_num,   B]
    ntgt_t = jnp.transpose(num_targets)                           # [d_num,   B]

    # Feature-major tiles are ~40 sublanes deep, so 16K lanes is only ~5 MiB of
    # double-buffered VMEM (fits v5e/v6e 128 MiB and v7x 64 MiB with large headroom)
    # while amortizing the ~0.35 us per-grid-step overhead.
    if tile_b is None:
        tile_b = 16384
    tile_b = max(128, _round_up(min(tile_b, _round_up(B, 128)), 128))
    num_tiles = pl.cdiv(B, tile_b)

    kernel = _make_loss_kernel(tuple(embedding_sizes), B, tile_b)

    ce_parts, sq_parts = pl.pallas_call(
        kernel,
        out_shape=(jax.ShapeDtypeStruct((num_tiles, 8, 128), jnp.float32),
                   jax.ShapeDtypeStruct((num_tiles, 8, 128), jnp.float32)),
        grid=(num_tiles,),
        in_specs=[
            pl.BlockSpec((c_total, tile_b), lambda i: (0, i)),    # cats  (feature-major)
            pl.BlockSpec((n_feat, tile_b), lambda i: (0, i)),     # cat targets
            pl.BlockSpec((d_num, tile_b), lambda i: (0, i)),      # nums
            pl.BlockSpec((d_num, tile_b), lambda i: (0, i)),      # num targets
        ],
        out_specs=(pl.BlockSpec((1, 8, 128), lambda i: (i, 0, 0)),
                   pl.BlockSpec((1, 8, 128), lambda i: (i, 0, 0))),
        compiler_params=pltpu.CompilerParams(
            dimension_semantics=("parallel",),        # independent per-tile partials
            vmem_limit_bytes=32 * 1024 * 1024,
        ),
    )(cats_t, tgts_t, nums_t, ntgt_t)

    # Tiny cross-tile reduction + normalization in the wrapper.
    inv_ce = 1.0 / float(B * n_feat)     # sum_f mean_b(...) / n_feat == sum / (B * n_feat)
    inv_mse = 1.0 / float(B * d_num)     # mean over all continuous elements
    ce_total = jnp.sum(ce_parts[:, 0, 0])
    sq_total = jnp.sum(sq_parts[:, 0, 0])
    return ce_total * inv_ce + sq_total * inv_mse


def custom_loss_ref(cats, cat_targets, nums, num_targets, *, embedding_sizes):
    """Pure-JAX reference mirroring the PyTorch module."""
    total_ce, pos = 0.0, 0
    for i, (v, _) in enumerate(embedding_sizes):
        logits = cats[:, pos:pos + v].astype(jnp.float32)
        lse = jax.scipy.special.logsumexp(logits, axis=-1)
        tgt_logit = jnp.take_along_axis(logits, cat_targets[:, i:i + 1], axis=-1)[:, 0]
        total_ce = total_ce + jnp.mean(lse - tgt_logit)
        pos += v
    cat_loss = total_ce / len(embedding_sizes)
    cont_loss = jnp.mean((nums.astype(jnp.float32) - num_targets.astype(jnp.float32)) ** 2)
    return cat_loss + cont_loss


if __name__ == "__main__":
    # Static module config (CustomLoss(embedding_sizes)):
    embedding_sizes = [(5, 3), (7, 4), (3, 2)]    # (cardinality, embed_dim); only cardinality matters
    c_total = sum(v for v, _ in embedding_sizes)  # 15
    B = 300                                       # not a multiple of 128 -> exercises masked ragged tail
    d_num = 6

    key = jax.random.PRNGKey(0)
    k1, k2, k3, k4 = jax.random.split(key, 4)

    cats = jax.random.normal(k1, (B, c_total), dtype=jnp.float32)
    cat_targets = jnp.stack(
        [jax.random.randint(jax.random.fold_in(k2, i), (B,), 0, v)
         for i, (v, _) in enumerate(embedding_sizes)],
        axis=1,
    ).astype(jnp.int32)                                    # [B, n_feat]
    nums = jax.random.normal(k3, (B, d_num), dtype=jnp.float32)
    num_targets = jax.random.normal(k4, (B, d_num), dtype=jnp.float32)

    ref = custom_loss_ref(cats, cat_targets, nums, num_targets,
                          embedding_sizes=embedding_sizes)

    # Multi-tile path (3 tiles, ragged last tile) and default single-tile path.
    for tb in (128, None):
        loss_fn = functools.partial(custom_loss, embedding_sizes=embedding_sizes, tile_b=tb)
        out = jax.jit(loss_fn)(cats, cat_targets, nums, num_targets)
        out = jax.block_until_ready(out)
        assert jnp.allclose(out, ref, rtol=2e-5, atol=2e-5), (tb, out, ref)

    print("KERNEL_OK")
</pallas_src>

<mosaic_0001>
module attributes {stable_mosaic.version = 11 : i64} {
  func.func @kernel(%arg0: i32, %arg1: memref<15x128xf32, #tpu.memory_space<vmem>>, %arg2: memref<3x128xi32, #tpu.memory_space<vmem>>, %arg3: memref<6x128xf32, #tpu.memory_space<vmem>>, %arg4: memref<6x128xf32, #tpu.memory_space<vmem>>, %arg5: memref<1x8x128xf32, #tpu.memory_space<vmem>>, %arg6: memref<1x8x128xf32, #tpu.memory_space<vmem>>) attributes {dimension_semantics = [#tpu.dimension_semantics<parallel>], iteration_bounds = array<i64: 3>, scalar_prefetch = 0 : i64, scratch_operands = 0 : i64, tpu.core_type = #tpu.core_type<tc>, window_params = [{transform_indices = @transform_0, window_bounds = array<i64: 15, 128>}, {transform_indices = @transform_1, window_bounds = array<i64: 3, 128>}, {transform_indices = @transform_2, window_bounds = array<i64: 6, 128>}, {transform_indices = @transform_3, window_bounds = array<i64: 6, 128>}, {transform_indices = @transform_4, window_bounds = array<i64: 1, 8, 128>}, {transform_indices = @transform_5, window_bounds = array<i64: 1, 8, 128>}]} {
    %c128_i32 = arith.constant 128 : i32
    %0 = arith.muli %arg0, %c128_i32 : i32
    %1 = tpu.iota {dimensions = array<i32: 1>} : vector<1x128xi32>
    %2 = vector.broadcast %0 : i32 to vector<1x128xi32>
    %3 = arith.addi %2, %1 : vector<1x128xi32>
    %c300_i32 = arith.constant 300 : i32
    %4 = vector.broadcast %c300_i32 : i32 to vector<1x128xi32>
    %5 = arith.cmpi slt, %3, %4 : vector<1x128xi32>
    %c0 = arith.constant 0 : index
    %c0_0 = arith.constant 0 : index
    %6 = vector.load %arg1[%c0, %c0_0] : memref<15x128xf32, #tpu.memory_space<vmem>>, vector<15x128xf32>
    %c0_1 = arith.constant 0 : index
    %c0_2 = arith.constant 0 : index
    %7 = vector.load %arg2[%c0_1, %c0_2] : memref<3x128xi32, #tpu.memory_space<vmem>>, vector<3x128xi32>
    %c0_3 = arith.constant 0 : index
    %c0_4 = arith.constant 0 : index
    %8 = vector.load %arg3[%c0_3, %c0_4] : memref<6x128xf32, #tpu.memory_space<vmem>>, vector<6x128xf32>
    %c0_5 = arith.constant 0 : index
    %c0_6 = arith.constant 0 : index
    %9 = vector.load %arg4[%c0_5, %c0_6] : memref<6x128xf32, #tpu.memory_space<vmem>>, vector<6x128xf32>
    %10 = tpu.iota {dimensions = array<i32: 0>} : vector<15x128xi32>
    %cst = arith.constant 0.000000e+00 : f32
    %11 = vector.broadcast %cst : f32 to vector<1x128xf32>
    %12 = vector.extract_strided_slice %6 {offsets = [0, 0], sizes = [5, 128], strides = [1, 1]} : vector<15x128xf32> to vector<5x128xf32>
    %cst_7 = arith.constant dense<0xFF800000> : vector<128xf32>
    %13 = vector.multi_reduction <maximumf>, %12, %cst_7 [0] : vector<5x128xf32> to vector<128xf32>
    %14 = vector.shape_cast %13 : vector<128xf32> to vector<1x128xf32>
    %15 = vector.broadcast %14 : vector<1x128xf32> to vector<5x128xf32>
    %16 = arith.subf %12, %15 : vector<5x128xf32>
    %17 = math.exp %16 : vector<5x128xf32>
    %cst_8 = arith.constant dense<0.000000e+00> : vector<128xf32>
    %18 = vector.multi_reduction <add>, %17, %cst_8 [0] : vector<5x128xf32> to vector<128xf32>
    %19 = vector.shape_cast %18 : vector<128xf32> to vector<1x128xf32>
    %20 = math.log %19 : vector<1x128xf32>
    %21 = arith.addf %14, %20 : vector<1x128xf32>
    %22 = vector.extract_strided_slice %7 {offsets = [0, 0], sizes = [1, 128], strides = [1, 1]} : vector<3x128xi32> to vector<1x128xi32>
    %c0_i32 = arith.constant 0 : i32
    %23 = vector.broadcast %c0_i32 : i32 to vector<1x128xi32>
    %24 = arith.addi %22, %23 : vector<1x128xi32>
    %25 = vector.extract_strided_slice %10 {offsets = [0, 0], sizes = [5, 128], strides = [1, 1]} : vector<15x128xi32> to vector<5x128xi32>
    %26 = vector.broadcast %24 : vector<1x128xi32> to vector<5x128xi32>
    %27 = arith.cmpi eq, %25, %26 : vector<5x128xi32>
    %cst_9 = arith.constant 0.000000e+00 : f32
    %28 = vector.broadcast %cst_9 : f32 to vector<5x128xf32>
    %29 = arith.select %27, %12, %28 : vector<5x128xi1>, vector<5x128xf32>
    %cst_10 = arith.constant dense<0.000000e+00> : vector<128xf32>
    %30 = vector.multi_reduction <add>, %29, %cst_10 [0] : vector<5x128xf32> to vector<128xf32>
    %31 = vector.shape_cast %30 : vector<128xf32> to vector<1x128xf32>
    %32 = arith.subf %21, %31 : vector<1x128xf32>
    %33 = arith.addf %11, %32 : vector<1x128xf32>
    %34 = vector.extract_strided_slice %6 {offsets = [5, 0], sizes = [7, 128], strides = [1, 1]} : vector<15x128xf32> to vector<7x128xf32>
    %cst_11 = arith.constant dense<0xFF800000> : vector<128xf32>
    %35 = vector.multi_reduction <maximumf>, %34, %cst_11 [0] : vector<7x128xf32> to vector<128xf32>
    %36 = vector.shape_cast %35 : vector<128xf32> to vector<1x128xf32>
    %37 = vector.broadcast %36 : vector<1x128xf32> to vector<7x128xf32>
    %38 = arith.subf %34, %37 : vector<7x128xf32>
    %39 = math.exp %38 : vector<7x128xf32>
    %cst_12 = arith.constant dense<0.000000e+00> : vector<128xf32>
    %40 = vector.multi_reduction <add>, %39, %cst_12 [0] : vector<7x128xf32> to vector<128xf32>
    %41 = vector.shape_cast %40 : vector<128xf32> to vector<1x128xf32>
    %42 = math.log %41 : vector<1x128xf32>
    %43 = arith.addf %36, %42 : vector<1x128xf32>
    %44 = vector.extract_strided_slice %7 {offsets = [1, 0], sizes = [1, 128], strides = [1, 1]} : vector<3x128xi32> to vector<1x128xi32>
    %c5_i32 = arith.constant 5 : i32
    %45 = vector.broadcast %c5_i32 : i32 to vector<1x128xi32>
    %46 = arith.addi %44, %45 : vector<1x128xi32>
    %47 = vector.extract_strided_slice %10 {offsets = [5, 0], sizes = [7, 128], strides = [1, 1]} : vector<15x128xi32> to vector<7x128xi32>
    %48 = vector.broadcast %46 : vector<1x128xi32> to vector<7x128xi32>
    %49 = arith.cmpi eq, %47, %48 : vector<7x128xi32>
    %cst_13 = arith.constant 0.000000e+00 : f32
    %50 = vector.broadcast %cst_13 : f32 to vector<7x128xf32>
    %51 = arith.select %49, %34, %50 : vector<7x128xi1>, vector<7x128xf32>
    %cst_14 = arith.constant dense<0.000000e+00> : vector<128xf32>
    %52 = vector.multi_reduction <add>, %51, %cst_14 [0] : vector<7x128xf32> to vector<128xf32>
    %53 = vector.shape_cast %52 : vector<128xf32> to vector<1x128xf32>
    %54 = arith.subf %43, %53 : vector<1x128xf32>
    %55 = arith.addf %33, %54 : vector<1x128xf32>
    %56 = vector.extract_strided_slice %6 {offsets = [12, 0], sizes = [3, 128], strides = [1, 1]} : vector<15x128xf32> to vector<3x128xf32>
    %cst_15 = arith.constant dense<0xFF800000> : vector<128xf32>
    %57 = vector.multi_reduction <maximumf>, %56, %cst_15 [0] : vector<3x128xf32> to vector<128xf32>
    %58 = vector.shape_cast %57 : vector<128xf32> to vector<1x128xf32>
    %59 = vector.broadcast %58 : vector<1x128xf32> to vector<3x128xf32>
    %60 = arith.subf %56, %59 : vector<3x128xf32>
    %61 = math.exp %60 : vector<3x128xf32>
    %cst_16 = arith.constant dense<0.000000e+00> : vector<128xf32>
    %62 = vector.multi_reduction <add>, %61, %cst_16 [0] : vector<3x128xf32> to vector<128xf32>
    %63 = vector.shape_cast %62 : vector<128xf32> to vector<1x128xf32>
    %64 = math.log %63 : vector<1x128xf32>
    %65 = arith.addf %58, %64 : vector<1x128xf32>
    %66 = vector.extract_strided_slice %7 {offsets = [2, 0], sizes = [1, 128], strides = [1, 1]} : vector<3x128xi32> to vector<1x128xi32>
    %c12_i32 = arith.constant 12 : i32
    %67 = vector.broadcast %c12_i32 : i32 to vector<1x128xi32>
    %68 = arith.addi %66, %67 : vector<1x128xi32>
    %69 = vector.extract_strided_slice %10 {offsets = [12, 0], sizes = [3, 128], strides = [1, 1]} : vector<15x128xi32> to vector<3x128xi32>
    %70 = vector.broadcast %68 : vector<1x128xi32> to vector<3x128xi32>
    %71 = arith.cmpi eq, %69, %70 : vector<3x128xi32>
    %cst_17 = arith.constant 0.000000e+00 : f32
    %72 = vector.broadcast %cst_17 : f32 to vector<3x128xf32>
    %73 = arith.select %71, %56, %72 : vector<3x128xi1>, vector<3x128xf32>
    %cst_18 = arith.constant dense<0.000000e+00> : vector<128xf32>
    %74 = vector.multi_reduction <add>, %73, %cst_18 [0] : vector<3x128xf32> to vector<128xf32>
    %75 = vector.shape_cast %74 : vector<128xf32> to vector<1x128xf32>
    %76 = arith.subf %65, %75 : vector<1x128xf32>
    %77 = arith.addf %55, %76 : vector<1x128xf32>
    %78 = arith.subf %8, %9 : vector<6x128xf32>
    %79 = arith.mulf %78, %78 : vector<6x128xf32>
    %cst_19 = arith.constant dense<0.000000e+00> : vector<128xf32>
    %80 = vector.multi_reduction <add>, %79, %cst_19 [0] : vector<6x128xf32> to vector<128xf32>
    %81 = vector.shape_cast %80 : vector<128xf32> to vector<1x128xf32>
    %cst_20 = arith.constant 0.000000e+00 : f32
    %82 = vector.broadcast %cst_20 : f32 to vector<1x128xf32>
    %83 = arith.select %5, %77, %82 : vector<1x128xi1>, vector<1x128xf32>
    %84 = vector.shape_cast %83 : vector<1x128xf32> to vector<1x1x128xf32>
    %cst_21 = arith.constant dense<0.000000e+00> : vector<1xf32>
    %85 = vector.multi_reduction <add>, %84, %cst_21 [1, 2] : vector<1x1x128xf32> to vector<1xf32>
    %86 = vector.shape_cast %85 : vector<1xf32> to vector<1x1x1xf32>
    %87 = vector.extract %86[0, 0, 0] : f32 from vector<1x1x1xf32>
    %cst_22 = arith.constant 0.000000e+00 : f32
    %88 = vector.broadcast %cst_22 : f32 to vector<1x128xf32>
    %89 = arith.select %5, %81, %88 : vector<1x128xi1>, vector<1x128xf32>
    %90 = vector.shape_cast %89 : vector<1x128xf32> to vector<1x1x128xf32>
    %cst_23 = arith.constant dense<0.000000e+00> : vector<1xf32>
    %91 = vector.multi_reduction <add>, %90, %cst_23 [1, 2] : vector<1x1x128xf32> to vector<1xf32>
    %92 = vector.shape_cast %91 : vector<1xf32> to vector<1x1x1xf32>
    %93 = vector.extract %92[0, 0, 0] : f32 from vector<1x1x1xf32>
    %94 = vector.broadcast %87 : f32 to vector<1x8x128xf32>
    %c0_24 = arith.constant 0 : index
    %c0_25 = arith.constant 0 : index
    %c0_26 = arith.constant 0 : index
    %95 = vector.load %arg5[%c0_24, %c0_25, %c0_26] : memref<1x8x128xf32, #tpu.memory_space<vmem>>, vector<1x8x128xf32>
    tpu.vector_store %arg5[%c0_24, %c0_25, %c0_26], %94 {strides = array<i32>} : memref<1x8x128xf32, #tpu.memory_space<vmem>>, vector<1x8x128xf32>,
    %96 = vector.broadcast %93 : f32 to vector<1x8x128xf32>
    %c0_27 = arith.constant 0 : index
    %c0_28 = arith.constant 0 : index
    %c0_29 = arith.constant 0 : index
    %97 = vector.load %arg6[%c0_27, %c0_28, %c0_29] : memref<1x8x128xf32, #tpu.memory_space<vmem>>, vector<1x8x128xf32>
    tpu.vector_store %arg6[%c0_27, %c0_28, %c0_29], %96 {strides = array<i32>} : memref<1x8x128xf32, #tpu.memory_space<vmem>>, vector<1x8x128xf32>,
    return
  }
  func.func @transform_0(%arg0: i32) -> (i32, i32) {
    %c0_i32 = arith.constant 0 : i32
    %c0_i32_0 = arith.constant 0 : i32
    return %c0_i32, %arg0 : i32, i32
  }
  func.func @transform_1(%arg0: i32) -> (i32, i32) {
    %c0_i32 = arith.constant 0 : i32
    %c0_i32_0 = arith.constant 0 : i32
    return %c0_i32, %arg0 : i32, i32
  }
  func.func @transform_2(%arg0: i32) -> (i32, i32) {
    %c0_i32 = arith.constant 0 : i32
    %c0_i32_0 = arith.constant 0 : i32
    return %c0_i32, %arg0 : i32, i32
  }
  func.func @transform_3(%arg0: i32) -> (i32, i32) {
    %c0_i32 = arith.constant 0 : i32
    %c0_i32_0 = arith.constant 0 : i32
    return %c0_i32, %arg0 : i32, i32
  }
  func.func @transform_4(%arg0: i32) -> (i32, i32, i32) {
    %c0_i32 = arith.constant 0 : i32
    %c0_i32_0 = arith.constant 0 : i32
    %c0_i32_1 = arith.constant 0 : i32
    return %arg0, %c0_i32, %c0_i32_0 : i32, i32, i32
  }
  func.func @transform_5(%arg0: i32) -> (i32, i32, i32) {
    %c0_i32 = arith.constant 0 : i32
    %c0_i32_0 = arith.constant 0 : i32
    %c0_i32_1 = arith.constant 0 : i32
    return %arg0, %c0_i32, %c0_i32_0 : i32, i32, i32
  }
}

</mosaic_0001>

<llo_original>
// kernel: custom_loss.1
$region0: #{custom_loss.1}
  #allocation0 [shape = 'u32[]', space=smem, size = 0x4, offset = 0x4, fixed_abs, tag = 'smem constant byte address 0x4 - core index']
  #allocation1 [shape = 'u32[144,128]{1,0:T(1,128)}', space=vmem, size = 0x12000, scoped, tag = 'internal scratch']
  %s0 = inlined_call_operand.hbm [shape: f32[15,300], index: 0, kind: input, shape index: {}]
  %s1 = inlined_call_operand.hbm [shape: s32[3,300], index: 1, kind: input, shape index: {}]
  %s2 = inlined_call_operand.hbm [shape: f32[6,300], index: 2, kind: input, shape index: {}]
  %s3 = inlined_call_operand.vmem [shape: f32[6,300], index: 3, kind: input, shape index: {}]
  %s4 = inlined_call_operand.vmem [shape: f32[3,8,128], index: 4, kind: output, shape index: {0}]
  %s5 = inlined_call_operand.vmem [shape: f32[3,8,128], index: 5, kind: output, shape index: {1}]
  %6 = xla_tuple %s4, %s5
  %s7 = sld [smem:[#allocation0]]
  $region69: #{custom_loss.1} parent=0
    _
  %s9 = ssub.s32 1, %s7
  %s10 = scalar_select 0, %s9, %s7
  $region1: #{custom_loss.1} parent=0
    #allocation2 [shape = 'u8[16384]{0}', space=vmem, size = 0x4000, scoped, tag = 'input window, operand 0']
    #allocation3 [shape = 's32[2]{0}', space=sflag, size = 0x8, scoped, tag = 'scoped memory for custom_loss.1']
    #allocation4 [shape = 'u8[4096]{0}', space=vmem, size = 0x1000, scoped, tag = 'input window, operand 1']
    #allocation5 [shape = 's32[2]{0}', space=sflag, size = 0x8, scoped, tag = 'scoped memory for custom_loss.1']
    #allocation6 [shape = 'u8[8192]{0}', space=vmem, size = 0x2000, scoped, tag = 'input window, operand 2']
    %11 = vsyncpa [#allocation3], 0
    %s12 = scalar_lea.sflag [#allocation3], 1
    %13 = vsyncpa %s12, 0
    %14 = vsyncpa [#allocation5], 0
    %s15 = scalar_lea.sflag [#allocation5], 1
    %16 = vsyncpa %s15, 0
    loop: start=0, step=1, limit=5
    $region2: #{custom_loss.1} parent=1 // loop_pre_header
      _
    $region3: #{custom_loss.1} parent=1 // loop_header
      %s18 = sphi 0, %s22
      %p19 = scmp.ge.s32.totalorder %s18, 5
      %s28 = sphi 0, %s30
      %s31 = sphi 0, %s28
      %s32 = sphi 0, %s31
      %s48 = sphi 0, %s32
      %s54 = sphi 0, %s56
      %s57 = sphi 0, %s54
      %s58 = sphi 0, %s57
      %s74 = sphi 0, %s58
      %s80 = sphi 0, %s82
      %s83 = sphi 0, %s80
      %s84 = sphi 0, %s83
      %s100 = sphi 0, %s84
      %s106 = sphi 0, %s108
      %s109 = sphi 0, %s106
      %s110 = sphi 0, %s109
      %s126 = sphi 0, %s110
      %s132 = sphi 0, %s134
      %s135 = sphi 0, %s132
      %s136 = sphi 0, %s135
      %s152 = sphi 0, %s136
      %s158 = sphi 0, %s160
      %s161 = sphi 0, %s158
      %s162 = sphi 0, %s161
      %s178 = sphi 0, %s162
    $region4: #{custom_loss.1} parent=1 // loop_header_branch
      %21 = sbr.rel (%p19) target = $region8
    $region5: #{custom_loss.1} parent=1 // loop_body
      %s23 = ssub.s32 %s18, 1
      %s24 = ssub.s32 %s18, 2
      %s25 = sadd.s32 %s18, 1
      %s26 = ssub.s32 %s18, %s25
      %p27 = scmp.eq.s32.totalorder %s26, 0
      %s29 = sadd.s32 %s28, 1
      %s30 = scalar_select %p27, %s28, %s29
      %p33 = pneg %p27
      %p34 = scmp.eq.s32.totalorder %s18, 2
      %p35 = por %p33, %p34
      %p36 = scmp.ne.s32.totalorder %s28, %s31
      %p37 = scmp.eq.s32.totalorder %s18, 0
      %p38 = por %p36, %p37
      %p39 = scmp.ne.s32.totalorder %s28, %s31
      %p40 = scmp.eq.s32.totalorder %s23, 2
      %p41 = por %p39, %p40
      %p42 = scmp.ne.s32.totalorder %s31, %s32
      %p43 = scmp.eq.s32.totalorder %s23, 0
      %p44 = por %p42, %p43
      %p45 = scmp.ne.s32.totalorder %s31, %s32
      %p46 = scmp.eq.s32.totalorder %s24, 2
      %p47 = por %p45, %p46
      %p49 = scmp.ne.s32.totalorder %s32, %s48
      %p50 = scmp.eq.s32.totalorder %s24, 0
      %p51 = por %p49, %p50
      %s52 = ssub.s32 %s18, %s25
      %p53 = scmp.eq.s32.totalorder %s52, 0
      %s55 = sadd.s32 %s54, 1
      %s56 = scalar_select %p53, %s54, %s55
      %p59 = pneg %p53
      %p60 = scmp.eq.s32.totalorder %s18, 2
      %p61 = por %p59, %p60
      %p62 = scmp.ne.s32.totalorder %s54, %s57
      %p63 = scmp.eq.s32.totalorder %s18, 0
      %p64 = por %p62, %p63
      %p65 = scmp.ne.s32.totalorder %s54, %s57
      %p66 = scmp.eq.s32.totalorder %s23, 2
      %p67 = por %p65, %p66
      %p68 = scmp.ne.s32.totalorder %s57, %s58
      %p69 = scmp.eq.s32.totalorder %s23, 0
      %p70 = por %p68, %p69
      %p71 = scmp.ne.s32.totalorder %s57, %s58
      %p72 = scmp.eq.s32.totalorder %s24, 2
      %p73 = por %p71, %p72
      %p75 = scmp.ne.s32.totalorder %s58, %s74
      %p76 = scmp.eq.s32.totalorder %s24, 0
      %p77 = por %p75, %p76
      %s78 = ssub.s32 %s18, %s25
      %p79 = scmp.eq.s32.totalorder %s78, 0
      %s81 = sadd.s32 %s80, 1
      %s82 = scalar_select %p79, %s80, %s81
      %p85 = pneg %p79
      %p86 = scmp.eq.s32.totalorder %s18, 2
      %p87 = por %p85, %p86
      %p88 = scmp.ne.s32.totalorder %s80, %s83
      %p89 = scmp.eq.s32.totalorder %s18, 0
      %p90 = por %p88, %p89
      %p91 = scmp.ne.s32.totalorder %s80, %s83
      %p92 = scmp.eq.s32.totalorder %s23, 2
      %p93 = por %p91, %p92
      %p94 = scmp.ne.s32.totalorder %s83, %s84
      %p95 = scmp.eq.s32.totalorder %s23, 0
      %p96 = por %p94, %p95
      %p97 = scmp.ne.s32.totalorder %s83, %s84
      %p98 = scmp.eq.s32.totalorder %s24, 2
      %p99 = por %p97, %p98
      %p101 = scmp.ne.s32.totalorder %s84, %s100
      %p102 = scmp.eq.s32.totalorder %s24, 0
      %p103 = por %p101, %p102
      %s104 = ssub.s32 %s18, %s25
      %p105 = scmp.eq.s32.totalorder %s104, 0
      %s107 = sadd.s32 %s106, 1
      %s108 = scalar_select %p105, %s106, %s107
      %p111 = pneg %p105
      %p112 = scmp.eq.s32.totalorder %s18, 2
      %p113 = por %p111, %p112
      %p114 = scmp.ne.s32.totalorder %s106, %s109
      %p115 = scmp.eq.s32.totalorder %s18, 0
      %p116 = por %p114, %p115
      %p117 = scmp.ne.s32.totalorder %s106, %s109
      %p118 = scmp.eq.s32.totalorder %s23, 2
      %p119 = por %p117, %p118
      %p120 = scmp.ne.s32.totalorder %s109, %s110
      %p121 = scmp.eq.s32.totalorder %s23, 0
      %p122 = por %p120, %p121
      %p123 = scmp.ne.s32.totalorder %s109, %s110
      %p124 = scmp.eq.s32.totalorder %s24, 2
      %p125 = por %p123, %p124
      %p127 = scmp.ne.s32.totalorder %s110, %s126
      %p128 = scmp.eq.s32.totalorder %s24, 0
      %p129 = por %p127, %p128
      %s130 = ssub.s32 %s18, %s25
      %p131 = scmp.eq.s32.totalorder %s130, 0
      %s133 = sadd.s32 %s132, 1
      %s134 = scalar_select %p131, %s132, %s133
      %p137 = pneg %p131
      %p138 = scmp.eq.s32.totalorder %s18, 2
      %p139 = por %p137, %p138
      %p140 = scmp.ne.s32.totalorder %s132, %s135
      %p141 = scmp.eq.s32.totalorder %s18, 0
      %p142 = por %p140, %p141
      %p143 = scmp.ne.s32.totalorder %s132, %s135
      %p144 = scmp.eq.s32.totalorder %s23, 2
      %p145 = por %p143, %p144
      %p146 = scmp.ne.s32.totalorder %s135, %s136
      %p147 = scmp.eq.s32.totalorder %s23, 0
      %p148 = por %p146, %p147
      %p149 = scmp.ne.s32.totalorder %s135, %s136
      %p150 = scmp.eq.s32.totalorder %s24, 2
      %p151 = por %p149, %p150
      %p153 = scmp.ne.s32.totalorder %s136, %s152
      %p154 = scmp.eq.s32.totalorder %s24, 0
      %p155 = por %p153, %p154
      %s156 = ssub.s32 %s18, %s25
      %p157 = scmp.eq.s32.totalorder %s156, 0
      %s159 = sadd.s32 %s158, 1
      %s160 = scalar_select %p157, %s158, %s159
      %p163 = pneg %p157
      %p164 = scmp.eq.s32.totalorder %s18, 2
      %p165 = por %p163, %p164
      %p166 = scmp.ne.s32.totalorder %s158, %s161
      %p167 = scmp.eq.s32.totalorder %s18, 0
      %p168 = por %p166, %p167
      %p169 = scmp.ne.s32.totalorder %s158, %s161
      %p170 = scmp.eq.s32.totalorder %s23, 2
      %p171 = por %p169, %p170
      %p172 = scmp.ne.s32.totalorder %s161, %s162
      %p173 = scmp.eq.s32.totalorder %s23, 0
      %p174 = por %p172, %p173
      %p175 = scmp.ne.s32.totalorder %s161, %s162
      %p176 = scmp.eq.s32.totalorder %s24, 2
      %p177 = por %p175, %p176
      %p179 = scmp.ne.s32.totalorder %s162, %s178
      %p180 = scmp.eq.s32.totalorder %s24, 0
      %p181 = por %p179, %p180
      %p182 = scmp.le.s32.totalorder 1, %s18
      %p183 = scmp.lt.s32.totalorder %s18, 4
      %p184 = pnand %p182, %p183
      %p185 = pneg %p184
      // Predicated region
      $region9: #{custom_loss.1} parent=5 // pred_check
        _
      $region10: #{custom_loss.1} parent=5 // pred_check_branch
        %187 = sbr.rel (%p184) target = $region12
      $region11: #{custom_loss.1} parent=5 // pred_region
        %s188 = ssub.s32 %s18, 1
      $region12: #{custom_loss.1} parent=5 // pred_fallthru
        _
      %p189 = scmp.lt.s32.totalorder %s18, 3
      // Predicated region
      $region13: #{custom_loss.1} parent=5 // pred_check
        %p190 = pneg %p189
      $region14: #{custom_loss.1} parent=5 // pred_check_branch
        %192 = sbr.rel (%p190) target = $region16
      $region15: #{custom_loss.1} parent=5 // pred_region
        // Predicated region
        $region17: #{custom_loss.1} parent=15 // pred_check
          %p193 = pneg %p38
        $region18: #{custom_loss.1} parent=15 // pred_check_branch
          %195 = sbr.rel (%p193) target = $region20
        $region19: #{custom_loss.1} parent=15 // pred_region
          %s196 = sand.u32 %s28, 1
          %s197 = scalar_lea.sflag [#allocation3], %s196
          %s198 = sand.u32 %s28, 1
          %s199 = smul.addr %s198, 16
          %s200 = scalar_lea.vmem [#allocation2], %s199
          %s202 = ssub.s32 256, 256
          %203 = vsyncadd %s197, %s202
          %s204 = smul.addr %s18, 128
          %s205 = scalar_lea.hbm %s0, %s204
          %s206 = sshll.u32 %s200, 4
          %s207 = int_to_ptr.vmem [resolvable:$true] %s206
          %212 = dma.hbm_to_vmem [thread:$0]  %s205, 256, %s207, %s197, 384, 128, 8
        $region20: #{custom_loss.1} parent=15 // pred_fallthru
          _
        // Predicated region
        $region21: #{custom_loss.1} parent=15 // pred_check
          %p213 = pneg %p64
        $region22: #{custom_loss.1} parent=15 // pred_check_branch
          %215 = sbr.rel (%p213) target = $region24
        $region23: #{custom_loss.1} parent=15 // pred_region
          %s216 = sand.u32 %s18, 1
          %s217 = scalar_lea.sflag [#allocation5], %s216
          %s218 = sand.u32 %s54, 1
          %s219 = smul.addr %s218, 4
          %s220 = scalar_lea.vmem [#allocation4], %s219
          %s222 = ssub.s32 64, 64
          %223 = vsyncadd %s217, %s222
          %s224 = smul.addr %s18, 64
          %s225 = scalar_lea.hbm %s1, %s224
          %s227 = sshll.u32 %s220, 4
          %s228 = int_to_ptr.vmem [resolvable:$true] %s227
          %230 = dma.hbm_to_vmem [thread:$0]  %s225, 64, %s228, %s217
        $region24: #{custom_loss.1} parent=15 // pred_fallthru
          _
        // Predicated region
        $region25: #{custom_loss.1} parent=15 // pred_check
          %p231 = pneg %p90
        $region26: #{custom_loss.1} parent=15 // pred_check_branch
          %233 = sbr.rel (%p231) target = $region28
        $region27: #{custom_loss.1} parent=15 // pred_region
          %s234 = sand.u32 %s18, 1
          %s235 = scalar_lea.sflag [#allocation5], %s234
          %s236 = sand.u32 %s80, 1
          %s237 = smul.addr %s236, 8
          %s238 = scalar_lea.vmem [#allocation6], %s237
          %s240 = ssub.s32 128, 128
          %241 = vsyncadd %s235, %s240
          %s242 = smul.addr %s18, 128
          %s243 = scalar_lea.hbm %s2, %s242
          %s245 = sshll.u32 %s238, 4
          %s246 = int_to_ptr.vmem [resolvable:$true] %s245
          %248 = dma.hbm_to_vmem [thread:$0]  %s243, 128, %s246, %s235
        $region28: #{custom_loss.1} parent=15 // pred_fallthru
          _
        // Predicated region
        $region29: #{custom_loss.1} parent=15 // pred_check
          %p249 = pneg %p116
        $region30: #{custom_loss.1} parent=15 // pred_check_branch
          %251 = sbr.rel (%p249) target = $region32
        $region31: #{custom_loss.1} parent=15 // pred_region
          %p252 = scmp.lt.s32.totalorder %s18, 2
          %s253 = scalar_select %p252, %s18, 2
          %s254 = smul.addr %s253, 8
          %s255 = scalar_lea.vmem %s3, %s254
        $region32: #{custom_loss.1} parent=15 // pred_fallthru
          _
      $region16: #{custom_loss.1} parent=5 // pred_fallthru
        _
      %p256 = scmp.le.s32.totalorder 1, %s18
      %p257 = scmp.lt.s32.totalorder %s18, 4
      %p258 = pnand %p256, %p257
      %p259 = pneg %p258
      // Predicated region
      $region33: #{custom_loss.1} parent=5 // pred_check
        _
      $region34: #{custom_loss.1} parent=5 // pred_check_branch
        %261 = sbr.rel (%p258) target = $region36
      $region35: #{custom_loss.1} parent=5 // pred_region
        %s262 = ssub.s32 %s18, 1
        %s263 = sand.u32 %s31, 1
        %s264 = scalar_lea.sflag [#allocation3], %s263
        %s265 = sand.u32 %s31, 1
        %s266 = smul.addr %s265, 16
        %s267 = scalar_lea.vmem [#allocation2], %s266
        // Predicated region
        $region37: #{custom_loss.1} parent=35 // pred_check
          %p268 = pneg %p44
        $region38: #{custom_loss.1} parent=35 // pred_check_branch
          %270 = sbr.rel (%p268) target = $region40
        $region39: #{custom_loss.1} parent=35 // pred_region
          %271 = dma.done %s264, 256
        $region40: #{custom_loss.1} parent=35 // pred_fallthru
          _
        %s272 = sand.u32 %s23, 1
        %s273 = scalar_lea.sflag [#allocation5], %s272
        %s274 = sand.u32 %s57, 1
        %s275 = smul.addr %s274, 4
        %s276 = scalar_lea.vmem [#allocation4], %s275
        // Predicated region
        $region41: #{custom_loss.1} parent=35 // pred_check
          %p277 = pneg %p70
        $region42: #{custom_loss.1} parent=35 // pred_check_branch
          %279 = sbr.rel (%p277) target = $region44
        $region43: #{custom_loss.1} parent=35 // pred_region
          %280 = dma.done %s273, 64
        $region44: #{custom_loss.1} parent=35 // pred_fallthru
          _
        %s281 = sand.u32 %s23, 1
        %s282 = scalar_lea.sflag [#allocation5], %s281
        %s283 = sand.u32 %s83, 1
        %s284 = smul.addr %s283, 8
        %s285 = scalar_lea.vmem [#allocation6], %s284
        // Predicated region
        $region45: #{custom_loss.1} parent=35 // pred_check
          %p286 = pneg %p96
        $region46: #{custom_loss.1} parent=35 // pred_check_branch
          %288 = sbr.rel (%p286) target = $region48
        $region47: #{custom_loss.1} parent=35 // pred_region
          %289 = dma.done %s282, 128
        $region48: #{custom_loss.1} parent=35 // pred_fallthru
          _
        %s290 = sand.u32 %s31, 1
        %s291 = scalar_lea.sflag [#allocation3], %s290
        %s292 = sand.u32 %s31, 1
        %s293 = smul.addr %s292, 16
        %s294 = scalar_lea.vmem [#allocation2], %s293
        %p295 = pneg %p44
        %p296 = pneg %p41
        %s297 = sand.u32 %s23, 1
        %s298 = scalar_lea.sflag [#allocation5], %s297
        %s299 = sand.u32 %s57, 1
        %s300 = smul.addr %s299, 4
        %s301 = scalar_lea.vmem [#allocation4], %s300
        %p302 = pneg %p70
        %p303 = pneg %p67
        %s304 = sand.u32 %s23, 1
        %s305 = scalar_lea.sflag [#allocation5], %s304
        %s306 = sand.u32 %s83, 1
        %s307 = smul.addr %s306, 8
        %s308 = scalar_lea.vmem [#allocation6], %s307
        %p309 = pneg %p96
        %p310 = pneg %p93
        %p311 = scmp.lt.s32.totalorder %s23, 2
        %s312 = scalar_select %p311, %s23, 2
        %s313 = smul.addr %s312, 8
        %s314 = scalar_lea.vmem %s3, %s313
        %p315 = pneg %p122
        %p316 = pneg %p119
        %p317 = pneg %p148
        %p318 = pneg %p145
        %p319 = scmp.lt.s32.totalorder %s23, 2
        %s320 = scalar_select %p319, %s23, 2
        %s321 = smul.addr %s320, 8
        %s322 = scalar_lea.vmem %s4, %s321
        %p323 = pneg %p174
        %p324 = pneg %p171
        %p325 = scmp.lt.s32.totalorder %s23, 2
        %s326 = scalar_select %p325, %s23, 2
        %s327 = smul.addr %s326, 8
        %s328 = scalar_lea.vmem %s5, %s327
        %p329 = scmp.lt.s32.totalorder %s23, 2
        %s330 = scalar_select %p329, %s23, 2
        %s331 = smul.addr %s330, 8
        %s332 = scalar_lea.vmem %s3, %s331
        %p333 = scmp.lt.s32.totalorder %s23, 2
        %s334 = scalar_select %p333, %s23, 2
        %s335 = smul.addr %s334, 8
        %s336 = scalar_lea.vmem %s4, %s335
        %p337 = scmp.lt.s32.totalorder %s23, 2
        %s338 = scalar_select %p337, %s23, 2
        %s339 = smul.addr %s338, 8
        %s340 = scalar_lea.vmem %s5, %s339
        %s341 = smul.u32 %s23, 128
        %v342 = vlaneseq
        %v343 = vand.u32 %v342, 127
        %v344 = vstv %s341
        %v345 = vadd.s32 %v344, %v343
        %vm346 = vcmp.lt.s32.totalorder %v345, 300
        %v347 = vld [vmem:[%s267] sm:$0xff]
        %v348 = vld [vmem:[%s267 + $0x8] sm:$0x7f]
        %v349 = vld [vmem:[%s276] sm:$0x7]
        %v350 = vld [vmem:[%s285] sm:$0x3f]
        %v351 = vld [vmem:[%s332] sm:$0x3f]
        %v352 = vlaneseq
        %v353 = vshrl.u32 %v352, 7
        %v354 = vadd.s32 %v353, 8
        %vm355 = vcmask 1044480
        %v356 = vsel %vm355, %v347, -inf
        %v357 = vrot.slane %v356, 4
        %v358 = vmax.f32 %v356, %v357
        %v359 = vrot.slane %v358, 2
        %v360 = vmax.f32 %v358, %v359
        %v361 = vrot.slane %v360, 1
        %v362 = vmax.f32 %v360, %v361
        %v363 = vsub.f32 %v347, %v362
        %v364 = vmul.f32 %v363, 1.442695
        %v365 = vpow.pop %v364
        %v366 = vsel %vm355, %v365, 0.0
        %v367 = vrot.slane %v366, 4
        %v368 = vadd.f32 %v366, %v367
        %v369 = vrot.slane %v368, 2
        %v370 = vadd.f32 %v368, %v369
        %v371 = vrot.slane %v370, 1
        %v372 = vadd.f32 %v370, %v371
        %v373 = vlog2.pop %v372
        %v374 = vmul.f32 %v373, 0.6931472
        %v375 = vadd.f32 %v362, %v374
        %v376 = vlaneseq
        %v377 = vshrl.u32 %v376, 7
        %v378 = vsub.s32 0, %v377
        %v379 = vrot.slane %v349, %v378
        %vm380 = vcmp.eq.s32.totalorder %v353, %v379
        %v381 = vsel %vm380, %v347, 0.0
        %v382 = vsel %vm355, %v381, 0.0
        %v383 = vrot.slane %v382, 4
        %v384 = vadd.f32 %v382, %v383
        %v385 = vrot.slane %v384, 2
        %v386 = vadd.f32 %v384, %v385
        %v387 = vrot.slane %v386, 1
        %v388 = vadd.f32 %v386, %v387
        %v389 = vsub.f32 %v375, %v388
        %v390 = vadd.f32 %v389, 0.0
        %vm391 = vcmask 1047557
        %v392 = vsel %vm391, %v347, -inf
        %vm393 = vcmask 1043456
        %v394 = vsel %vm393, %v348, -inf
        %v395 = vmax.f32 %v392, %v394
        %v396 = vrot.slane %v395, 4
        %v397 = vmax.f32 %v395, %v396
        %v398 = vrot.slane %v397, 2
        %v399 = vmax.f32 %v397, %v398
        %v400 = vrot.slane %v399, 1
        %v401 = vmax.f32 %v399, %v400
        %v402 = vsub.f32 %v347, %v401
        %v403 = vsub.f32 %v348, %v401
        %v404 = vmul.f32 %v402, 1.442695
        %v405 = vpow.pop %v404
        %v406 = vmul.f32 %v403, 1.442695
        %v407 = vpow.pop %v406
        %vm410 = vcmask 1042432
        %v411 = vrot.slane %v405, 5
        %v412 = vrot.slane %v407, 5
        %v413 = vsel %vm410, %v411, %v412
        %vm415 = vcmask 1046528
        %v416 = vsel %vm415, %v413, 0.0
        %v417 = vrot.slane %v416, 4
        %v418 = vadd.f32 %v416, %v417
        %v419 = vrot.slane %v418, 2
        %v420 = vadd.f32 %v418, %v419
        %v421 = vrot.slane %v420, 1
        %v422 = vadd.f32 %v420, %v421
        %v423 = vlog2.pop %v422
        %v424 = vmul.f32 %v423, 0.6931472
        %v425 = vadd.f32 %v401, %v424
        %v426 = vadd.s32 %v349, 5
        %v427 = vlaneseq
        %v428 = vshrl.u32 %v427, 7
        %v429 = vsub.s32 1, %v428
        %v430 = vrot.slane %v426, %v429
        %vm431 = vcmp.eq.s32.totalorder %v353, %v430
        %vm432 = vcmp.eq.s32.totalorder %v354, %v430
        %v433 = vsel %vm431, %v347, 0.0
        %v434 = vsel %vm432, %v348, 0.0
        %v437 = vrot.slane %v433, 5
        %v438 = vrot.slane %v434, 5
        %v439 = vsel %vm410, %v437, %v438
        %v441 = vsel %vm415, %v439, 0.0
        %v442 = vrot.slane %v441, 4
        %v443 = vadd.f32 %v441, %v442
        %v444 = vrot.slane %v443, 2
        %v445 = vadd.f32 %v443, %v444
        %v446 = vrot.slane %v445, 1
        %v447 = vadd.f32 %v445, %v446
        %v448 = vsub.f32 %v425, %v447
        %v449 = vadd.f32 %v390, %v448
        %vm450 = vcmask 1046532
        %v451 = vsel %vm450, %v348, -inf
        %v452 = vrot.slane %v451, 4
        %v453 = vmax.f32 %v451, %v452
        %v454 = vrot.slane %v453, 2
        %v455 = vmax.f32 %v453, %v454
        %v456 = vrot.slane %v455, 1
        %v457 = vmax.f32 %v455, %v456
        %v458 = vsub.f32 %v348, %v457
        %v459 = vmul.f32 %v458, 1.442695
        %v460 = vpow.pop %v459
        %v462 = vrot.slane %v460, 4
        %v464 = vsel %vm410, %v462, 0.0
        %v465 = vrot.slane %v464, 4
        %v466 = vadd.f32 %v464, %v465
        %v467 = vrot.slane %v466, 2
        %v468 = vadd.f32 %v466, %v467
        %v469 = vrot.slane %v468, 1
        %v470 = vadd.f32 %v468, %v469
        %v471 = vlog2.pop %v470
        %v472 = vmul.f32 %v471, 0.6931472
        %v473 = vadd.f32 %v457, %v472
        %v474 = vadd.s32 %v349, 12
        %v475 = vlaneseq
        %v476 = vshrl.u32 %v475, 7
        %v477 = vsub.s32 2, %v476
        %v478 = vrot.slane %v474, %v477
        %vm479 = vcmp.eq.s32.totalorder %v354, %v478
        %v480 = vsel %vm479, %v348, 0.0
        %v482 = vrot.slane %v480, 4
        %v484 = vsel %vm410, %v482, 0.0
        %v485 = vrot.slane %v484, 4
        %v486 = vadd.f32 %v484, %v485
        %v487 = vrot.slane %v486, 2
        %v488 = vadd.f32 %v486, %v487
        %v489 = vrot.slane %v488, 1
        %v490 = vadd.f32 %v488, %v489
        %v491 = vsub.f32 %v473, %v490
        %v492 = vadd.f32 %v449, %v491
        %v493 = vsub.f32 %v350, %v351
        %v494 = vmul.f32 %v493, %v493
        %vm495 = vcmask 1045504
        %v496 = vsel %vm495, %v494, 0.0
        %v497 = vrot.slane %v496, 4
        %v498 = vadd.f32 %v496, %v497
        %v499 = vrot.slane %v498, 2
        %v500 = vadd.f32 %v498, %v499
        %v501 = vrot.slane %v500, 1
        %v502 = vadd.f32 %v500, %v501
        %v503 = vsel %vm346, %v492, 0.0
        %vm504 = vcmask 1040384
        %v505 = vsel %vm504, %v503, 0.0
        %506 = vadd.xlane.f32.xlu0 %v505
        %v507 = vpop.xlane.xlu0 %506
        %v508 = vrot.slane %v507, 4
        %v509 = vadd.f32 %v507, %v508
        %v510 = vrot.slane %v509, 2
        %v511 = vadd.f32 %v509, %v510
        %v512 = vrot.slane %v511, 1
        %v513 = vadd.f32 %v511, %v512
        %s514 = vtos %v513
        %v515 = vsel %vm346, %v502, 0.0
        %v516 = vsel %vm504, %v515, 0.0
        %517 = vadd.xlane.f32.xlu0 %v516
        %v518 = vpop.xlane.xlu0 %517
        %v519 = vrot.slane %v518, 4
        %v520 = vadd.f32 %v518, %v519
        %v521 = vrot.slane %v520, 2
        %v522 = vadd.f32 %v520, %v521
        %v523 = vrot.slane %v522, 1
        %v524 = vadd.f32 %v522, %v523
        %s525 = vtos %v524
        %v526 = vstv %s514
        %527 = vst [vmem:[%s336] sm:$0xff] %v526
        %v528 = vstv %s525
        %529 = vst [vmem:[%s340] sm:$0xff] %v528
        %p530 = scmp.lt.s32.totalorder %s23, 2
        %s531 = scalar_select %p530, %s23, 2
        %s532 = smul.addr %s531, 8
        %s533 = scalar_lea.vmem %s4, %s532
        %p534 = scmp.lt.s32.totalorder %s23, 2
        %s535 = scalar_select %p534, %s23, 2
        %s536 = smul.addr %s535, 8
        %s537 = scalar_lea.vmem %s5, %s536
        // Predicated region
        $region49: #{custom_loss.1} parent=35 // pred_check
          %p538 = pneg %p145
        $region50: #{custom_loss.1} parent=35 // pred_check_branch
          %540 = sbr.rel (%p538) target = $region52
        $region51: #{custom_loss.1} parent=35 // pred_region
          _
        $region52: #{custom_loss.1} parent=35 // pred_fallthru
          _
        // Predicated region
        $region53: #{custom_loss.1} parent=35 // pred_check
          %p541 = pneg %p171
        $region54: #{custom_loss.1} parent=35 // pred_check_branch
          %543 = sbr.rel (%p541) target = $region56
        $region55: #{custom_loss.1} parent=35 // pred_region
          _
        $region56: #{custom_loss.1} parent=35 // pred_fallthru
          _
      $region36: #{custom_loss.1} parent=5 // pred_fallthru
        _
      %p544 = scmp.le.s32.totalorder 2, %s18
      // Predicated region
      $region57: #{custom_loss.1} parent=5 // pred_check
        %p545 = pneg %p544
      $region58: #{custom_loss.1} parent=5 // pred_check_branch
        %547 = sbr.rel (%p545) target = $region60
      $region59: #{custom_loss.1} parent=5 // pred_region
        %s548 = ssub.s32 %s18, 2
        // Predicated region
        $region61: #{custom_loss.1} parent=59 // pred_check
          %p549 = pneg %p151
        $region62: #{custom_loss.1} parent=59 // pred_check_branch
          %551 = sbr.rel (%p549) target = $region64
        $region63: #{custom_loss.1} parent=59 // pred_region
          %p552 = scmp.lt.s32.totalorder %s24, 2
          %s553 = scalar_select %p552, %s24, 2
          %s554 = smul.addr %s553, 8
          %s555 = scalar_lea.vmem %s4, %s554
        $region64: #{custom_loss.1} parent=59 // pred_fallthru
          _
        // Predicated region
        $region65: #{custom_loss.1} parent=59 // pred_check
          %p556 = pneg %p177
        $region66: #{custom_loss.1} parent=59 // pred_check_branch
          %558 = sbr.rel (%p556) target = $region68
        $region67: #{custom_loss.1} parent=59 // pred_region
          %p559 = scmp.lt.s32.totalorder %s24, 2
          %s560 = scalar_select %p559, %s24, 2
          %s561 = smul.addr %s560, 8
          %s562 = scalar_lea.vmem %s5, %s561
        $region68: #{custom_loss.1} parent=59 // pred_fallthru
          _
      $region60: #{custom_loss.1} parent=5 // pred_fallthru
        _
    $region6: #{custom_loss.1} parent=1 // loop_footer
      %s22 = sadd.s32 1, %s18
    $region7: #{custom_loss.1} parent=1 // loop_footer_branch
      %17 = sbr.rel target = $region3
    $region8: #{custom_loss.1} parent=1 // loop_exit
      _
    %563 = vsyncpa [#allocation3], 1
    %s564 = scalar_lea.sflag [#allocation3], 1
    %565 = vsyncpa %s564, 1
    %566 = vsyncpa [#allocation5], 1
    %s567 = scalar_lea.sflag [#allocation5], 1
    %568 = vsyncpa %s567, 1

</llo_original>
